<compile_context>
chip_gen: v7x
topology: tpu7x:2x2x1
jax: 0.10.0
libtpu: 0.0.40
codegen_flags: <defaults>
</compile_context>

<pallas_src>
import jax
import jax.numpy as jnp
from jax import lax
from jax.experimental import pallas as pl
from jax.experimental.pallas import tpu as pltpu

NUM_CLASSES = 16   # C
FEAT_DIM = 32      # D
BATCH = 8          # B
LAYERS = 2
EPS = 1e-12


# --------------------------------------------------------------------------- #
# Stage 1: AGNN propagation over the fully-connected class graph (runs ONCE). #
# --------------------------------------------------------------------------- #
def agnn_propagate_kernel(beta_ref, feat_ref, y_ref):
    """beta_ref: SMEM [LAYERS]; feat_ref: VMEM [C, D]; y_ref: VMEM [C, D]."""
    y = feat_ref[...].astype(jnp.float32)                          # [C, D]

    for l in range(LAYERS):                                        # small static unroll
        beta = beta_ref[l]
        # F.normalize(y, p=2, dim=-1): y / clamp_min(||y||, eps)
        sq = jnp.sum(y * y, axis=-1, keepdims=True)                # [C, 1]
        norm_h = y * lax.rsqrt(jnp.maximum(sq, EPS * EPS))         # EUP rsqrt + VPU mul
        # cosine similarity (dst x src): contract feature dim on the MXU.
        cos = lax.dot_general(norm_h, norm_h,
                              (((1,), (1,)), ((), ())),
                              preferred_element_type=jnp.float32)  # [C, C]
        e = beta * cos
        # edge_softmax over incoming edges of each dst = row softmax, stabilized.
        e = e - jnp.max(e, axis=-1, keepdims=True)
        p = jnp.exp(e)
        denom = jnp.sum(p, axis=-1, keepdims=True)                 # [C, 1]
        p = p * pl.reciprocal(denom, approx=True)                  # EUP reciprocal
        # message passing: h'_dst = sum_src P[dst, src] * h_src
        y = jnp.dot(p, y, preferred_element_type=jnp.float32)      # [C, D]

    y_ref[...] = y.astype(y_ref.dtype)


# --------------------------------------------------------------------------- #
# Stage 2: batch projection  out_T[C, bm] = y[C, D] @ x_tile[bm, D]^T          #
# --------------------------------------------------------------------------- #
def projection_kernel(y_ref, x_ref, out_t_ref):
    out_t = lax.dot_general(y_ref[...], x_ref[...],
                            (((1,), (1,)), ((), ())),              # contract D with D
                            preferred_element_type=jnp.float32)    # [C, bm]
    out_t_ref[...] = out_t.astype(out_t_ref.dtype)


def attention_gcn_forward(x, feat, betas, *, bm=None, feed_dtype=jnp.float32):
    B, D = x.shape
    C, Df = feat.shape
    assert D == Df

    # ---- AGNN propagation, once (batch independent; tiny, single grid step) ----
    y = pl.pallas_call(
        agnn_propagate_kernel,
        out_shape=jax.ShapeDtypeStruct((C, D), feed_dtype),
        grid_spec=pl.GridSpec(
            grid=(1,),
            in_specs=[
                pl.BlockSpec(memory_space=pltpu.MemorySpace.SMEM),   # betas
                pl.BlockSpec((C, D), lambda i: (0, 0)),              # feat (full)
            ],
            out_specs=pl.BlockSpec((C, D), lambda i: (0, 0)),
        ),
    )(betas, feat)

    # ---- batch tile size: large, 128-aligned, >=2 steps when possible (v7x) ----
    if bm is None:
        if B % 256 == 0:
            bm = min(1024, B // 2)          # multiple of 128 since B % 256 == 0
            while B % bm:
                bm -= 128
        else:
            bm = B                          # single full-extent tile (small B)
    assert bm == B or (B % bm == 0 and bm % 128 == 0), (
        "bm must equal B or be a 128-multiple dividing B (lane-dense out tiles)")
    num_tiles = B // bm

    x_in = x.astype(feed_dtype)             # bf16 feed halves the dominant HBM stream
    cost = pl.CostEstimate(
        flops=2 * B * C * D,
        transcendentals=0,
        bytes_accessed=(B * D * x_in.dtype.itemsize
                        + C * D * y.dtype.itemsize
                        + B * C * 4),
    )

    out_t = pl.pallas_call(
        projection_kernel,
        out_shape=jax.ShapeDtypeStruct((C, B), jnp.float32),
        grid_spec=pl.GridSpec(
            grid=(num_tiles,),
            in_specs=[
                pl.BlockSpec((C, D), lambda i: (0, 0)),              # y (resident)
                pl.BlockSpec((bm, D), lambda i: (i, 0)),             # x tile
            ],
            out_specs=pl.BlockSpec((C, bm), lambda i: (0, i)),       # lane-dense
        ),
        compiler_params=pltpu.CompilerParams(
            dimension_semantics=("parallel",)),
        cost_estimate=cost,
    )(y, x_in)

    # one cheap [C, B] -> [B, C] transpose in the wrapper
    return out_t.T


def reference_forward(x, feat, betas):
    """Pure-JAX reference mirroring the PyTorch/DGL semantics (f32 throughout)."""
    y = feat.astype(jnp.float32)
    for l in range(LAYERS):
        norm_h = y / jnp.maximum(
            jnp.linalg.norm(y, axis=-1, keepdims=True), EPS)
        e = betas[l] * (norm_h @ norm_h.T)
        p = jax.nn.softmax(e, axis=-1)
        y = p @ y
    return x.astype(jnp.float32) @ y.T


if __name__ == "__main__":
    key = jax.random.PRNGKey(0)
    kx, kf = jax.random.split(key)
    x = jax.random.normal(kx, (BATCH, FEAT_DIM), dtype=jnp.float32)
    feat = jax.random.normal(kf, (NUM_CLASSES, FEAT_DIM), dtype=jnp.float32)
    # AGNNConv beta parameter: init_beta = 1.0 for every layer (deterministic).
    betas = jnp.ones((LAYERS,), dtype=jnp.float32)
    # TODO(synk): gen_G / gen_A read a pickle adjacency file; the resulting edge
    # weights are never consumed by AGNNConv's forward, so they are omitted here.

    ref = reference_forward(x, feat, betas)

    # f32 path (matches the PyTorch module's dtype).
    out = jax.block_until_ready(attention_gcn_forward(x, feat, betas))
    assert out.shape == (BATCH, NUM_CLASSES)
    assert jnp.allclose(out, ref, atol=5e-3, rtol=5e-3), (
        f"f32 max err {jnp.max(jnp.abs(out - ref))}")

    # bf16-feed path (v6e/v7x MXU/HBM optimization, f32 accumulation).
    out_bf16 = jax.block_until_ready(
        attention_gcn_forward(x, feat, betas, feed_dtype=jnp.bfloat16))
    assert jnp.allclose(out_bf16, ref, atol=5e-2, rtol=5e-2), (
        f"bf16 max err {jnp.max(jnp.abs(out_bf16 - ref))}")

    print("KERNEL_OK")
</pallas_src>

<mosaic_0001>
module attributes {stable_mosaic.version = 11 : i64} {
  func.func @agnn_propagate_kernel(%arg0: i32, %arg1: memref<2xf32, #tpu.memory_space<smem>>, %arg2: memref<16x32xf32, #tpu.memory_space<vmem>>, %arg3: memref<16x32xf32, #tpu.memory_space<vmem>>) attributes {dimension_semantics = [#tpu.dimension_semantics<arbitrary>], iteration_bounds = array<i64: 1>, scalar_prefetch = 0 : i64, scratch_operands = 0 : i64, tpu.core_type = #tpu.core_type<tc>, window_params = [{transform_indices = @transform_0, window_bounds = array<i64: 2>}, {pipeline_mode = #tpu.pipeline_mode<synchronous>, transform_indices = @transform_1, window_bounds = array<i64: 16, 32>}, {pipeline_mode = #tpu.pipeline_mode<synchronous>, transform_indices = @transform_2, window_bounds = array<i64: 16, 32>}]} {
    %c0 = arith.constant 0 : index
    %c0_0 = arith.constant 0 : index
    %0 = vector.load %arg2[%c0, %c0_0] : memref<16x32xf32, #tpu.memory_space<vmem>>, vector<16x32xf32>
    %c0_1 = arith.constant 0 : index
    %1 = memref.load %arg1[%c0_1] : memref<2xf32, #tpu.memory_space<smem>>
    %2 = arith.mulf %0, %0 : vector<16x32xf32>
    %cst = arith.constant dense<0.000000e+00> : vector<16xf32>
    %3 = vector.multi_reduction <add>, %2, %cst [1] : vector<16x32xf32> to vector<16xf32>
    %4 = vector.shape_cast %3 : vector<16xf32> to vector<16x1xf32>
    %cst_2 = arith.constant 1.000000e-24 : f32
    %5 = vector.broadcast %cst_2 : f32 to vector<16x1xf32>
    %6 = arith.maximumf %4, %5 : vector<16x1xf32>
    %7 = math.rsqrt %6 : vector<16x1xf32>
    %8 = vector.broadcast %7 : vector<16x1xf32> to vector<16x32xf32>
    %9 = arith.mulf %0, %8 : vector<16x32xf32>
    %cst_3 = arith.constant dense<0.000000e+00> : vector<16x16xf32>
    %10 = tpu.matmul %9, %9, %cst_3 {dimension_numbers = #tpu.dot_dimension_numbers<[1], [1], [0], [0], [0, 0, 1, 0], [], []>} : vector<16x32xf32>, vector<16x32xf32>, vector<16x16xf32> -> vector<16x16xf32>
    %11 = vector.broadcast %1 : f32 to vector<16x16xf32>
    %12 = arith.mulf %11, %10 : vector<16x16xf32>
    %cst_4 = arith.constant dense<0xFF800000> : vector<16xf32>
    %13 = vector.multi_reduction <maximumf>, %12, %cst_4 [1] : vector<16x16xf32> to vector<16xf32>
    %14 = vector.shape_cast %13 : vector<16xf32> to vector<16x1xf32>
    %15 = vector.broadcast %14 : vector<16x1xf32> to vector<16x16xf32>
    %16 = arith.subf %12, %15 : vector<16x16xf32>
    %17 = math.exp %16 : vector<16x16xf32>
    %cst_5 = arith.constant dense<0.000000e+00> : vector<16xf32>
    %18 = vector.multi_reduction <add>, %17, %cst_5 [1] : vector<16x16xf32> to vector<16xf32>
    %19 = vector.shape_cast %18 : vector<16xf32> to vector<16x1xf32>
    %20 = tpu.reciprocal %19 {approx = true} : vector<16x1xf32> -> vector<16x1xf32>
    %21 = vector.broadcast %20 : vector<16x1xf32> to vector<16x16xf32>
    %22 = arith.mulf %17, %21 : vector<16x16xf32>
    %cst_6 = arith.constant dense<0.000000e+00> : vector<16x32xf32>
    %23 = tpu.matmul %22, %0, %cst_6 {dimension_numbers = #tpu.dot_dimension_numbers<[1], [0], [0], [1], [0, 0, 1, 1], [], []>} : vector<16x16xf32>, vector<16x32xf32>, vector<16x32xf32> -> vector<16x32xf32>
    %c1 = arith.constant 1 : index
    %24 = memref.load %arg1[%c1] : memref<2xf32, #tpu.memory_space<smem>>
    %25 = arith.mulf %23, %23 : vector<16x32xf32>
    %cst_7 = arith.constant dense<0.000000e+00> : vector<16xf32>
    %26 = vector.multi_reduction <add>, %25, %cst_7 [1] : vector<16x32xf32> to vector<16xf32>
    %27 = vector.shape_cast %26 : vector<16xf32> to vector<16x1xf32>
    %cst_8 = arith.constant 1.000000e-24 : f32
    %28 = vector.broadcast %cst_8 : f32 to vector<16x1xf32>
    %29 = arith.maximumf %27, %28 : vector<16x1xf32>
    %30 = math.rsqrt %29 : vector<16x1xf32>
    %31 = vector.broadcast %30 : vector<16x1xf32> to vector<16x32xf32>
    %32 = arith.mulf %23, %31 : vector<16x32xf32>
    %cst_9 = arith.constant dense<0.000000e+00> : vector<16x16xf32>
    %33 = tpu.matmul %32, %32, %cst_9 {dimension_numbers = #tpu.dot_dimension_numbers<[1], [1], [0], [0], [0, 0, 1, 0], [], []>} : vector<16x32xf32>, vector<16x32xf32>, vector<16x16xf32> -> vector<16x16xf32>
    %34 = vector.broadcast %24 : f32 to vector<16x16xf32>
    %35 = arith.mulf %34, %33 : vector<16x16xf32>
    %cst_10 = arith.constant dense<0xFF800000> : vector<16xf32>
    %36 = vector.multi_reduction <maximumf>, %35, %cst_10 [1] : vector<16x16xf32> to vector<16xf32>
    %37 = vector.shape_cast %36 : vector<16xf32> to vector<16x1xf32>
    %38 = vector.broadcast %37 : vector<16x1xf32> to vector<16x16xf32>
    %39 = arith.subf %35, %38 : vector<16x16xf32>
    %40 = math.exp %39 : vector<16x16xf32>
    %cst_11 = arith.constant dense<0.000000e+00> : vector<16xf32>
    %41 = vector.multi_reduction <add>, %40, %cst_11 [1] : vector<16x16xf32> to vector<16xf32>
    %42 = vector.shape_cast %41 : vector<16xf32> to vector<16x1xf32>
    %43 = tpu.reciprocal %42 {approx = true} : vector<16x1xf32> -> vector<16x1xf32>
    %44 = vector.broadcast %43 : vector<16x1xf32> to vector<16x16xf32>
    %45 = arith.mulf %40, %44 : vector<16x16xf32>
    %cst_12 = arith.constant dense<0.000000e+00> : vector<16x32xf32>
    %46 = tpu.matmul %45, %23, %cst_12 {dimension_numbers = #tpu.dot_dimension_numbers<[1], [0], [0], [1], [0, 0, 1, 1], [], []>} : vector<16x16xf32>, vector<16x32xf32>, vector<16x32xf32> -> vector<16x32xf32>
    %c0_13 = arith.constant 0 : index
    %c0_14 = arith.constant 0 : index
    %47 = vector.load %arg3[%c0_13, %c0_14] : memref<16x32xf32, #tpu.memory_space<vmem>>, vector<16x32xf32>
    tpu.vector_store %arg3[%c0_13, %c0_14], %46 {strides = array<i32>} : memref<16x32xf32, #tpu.memory_space<vmem>>, vector<16x32xf32>,
    return
  }
  func.func @transform_0(%arg0: i32) -> i32 {
    %c0_i32 = arith.constant 0 : i32
    %c0_i32_0 = arith.constant 0 : i32
    return %c0_i32 : i32
  }
  func.func @transform_1(%arg0: i32) -> (i32, i32) {
    %c0_i32 = arith.constant 0 : i32
    %c0_i32_0 = arith.constant 0 : i32
    %c0_i32_1 = arith.constant 0 : i32
    return %c0_i32, %c0_i32_0 : i32, i32
  }
  func.func @transform_2(%arg0: i32) -> (i32, i32) {
    %c0_i32 = arith.constant 0 : i32
    %c0_i32_0 = arith.constant 0 : i32
    %c0_i32_1 = arith.constant 0 : i32
    return %c0_i32, %c0_i32_0 : i32, i32
  }
}

</mosaic_0001>

<llo_original>
// kernel: tpu_custom_call.1
$region0: #{tpu_custom_call.1}
  #allocation0 [shape = 'u32[]', space=smem, size = 0x4, offset = 0x4, fixed_abs, tag = 'smem constant byte address 0x4 - core index']
  #allocation1 [shape = 'u32[144,128]{1,0:T(1,128)}', space=vmem, size = 0x12000, scoped, tag = 'internal scratch']
  %s0 = inlined_call_operand.hbm [shape: f32[2], index: 0, kind: input, shape index: {}]
  %s1 = inlined_call_operand.hbm [shape: f32[16,32], index: 1, kind: input, shape index: {}]
  %s2 = inlined_call_operand.hbm [shape: f32[16,32], index: 2, kind: output, shape index: {}]
  %s3 = sld [smem:[#allocation0]]
  $region26: #{tpu_custom_call.1} parent=0
    _
  %s5 = ssub.s32 1, %s3
  %s6 = scalar_select 0, %s5, %s3
  $region1: #{tpu_custom_call.1} parent=0
    #allocation2 [shape = 'u8[512]{0}', space=smem, size = 0x200, scoped, tag = 'input window, operand 0, single buffered']
    #allocation3 [shape = 's32[1]{0}', space=sflag, size = 0x4, scoped, tag = 'scoped memory for tpu_custom_call.1']
    #allocation4 [shape = 's32[1]{0}', space=sflag, size = 0x4, scoped, tag = 'scoped memory for tpu_custom_call.1']
    #allocation5 [shape = 's32[1]{0}', space=sflag, size = 0x4, scoped, tag = 'scoped memory for tpu_custom_call.1']
    #allocation6 [shape = 'u8[8192]{0}', space=vmem, size = 0x2000, scoped, tag = 'input window, operand 1, single buffered']
    #allocation7 [shape = 'u8[8192]{0}', space=vmem, size = 0x2000, scoped, tag = 'output window, operand 0, single buffered']
    %7 = vsyncpa [#allocation5], 0
    %8 = vsyncpa [#allocation3], 0
    %9 = vsyncpa [#allocation4], 0
    // Predicated region
    $region2: #{tpu_custom_call.1} parent=1 // pred_check
      _
    $region3: #{tpu_custom_call.1} parent=1 // pred_check_branch
      %11 = sbr.rel (0) target = $region5
    $region4: #{tpu_custom_call.1} parent=1 // pred_region
      %s13 = ssub.s32 16, 16
      %14 = vsyncadd [#allocation5], %s13
      %17 = dma.hbm_to_smem %s0, 16, [#allocation2], [#allocation5]
    $region5: #{tpu_custom_call.1} parent=1 // pred_fallthru
      _
    // Predicated region
    $region6: #{tpu_custom_call.1} parent=1 // pred_check
      _
    $region7: #{tpu_custom_call.1} parent=1 // pred_check_branch
      %19 = sbr.rel (0) target = $region9
    $region8: #{tpu_custom_call.1} parent=1 // pred_region
      %s21 = ssub.s32 256, 256
      %22 = vsyncadd [#allocation3], %s21
      %s23 = sshll.u32 [#allocation6], 4
      %s24 = int_to_ptr.vmem [resolvable:$true] %s23
      %29 = dma.hbm_to_vmem [thread:$0]  %s1, 256, %s24, [#allocation3], 128, 128, 8
    $region9: #{tpu_custom_call.1} parent=1 // pred_fallthru
      _
    // Predicated region
    $region10: #{tpu_custom_call.1} parent=1 // pred_check
      _
    $region11: #{tpu_custom_call.1} parent=1 // pred_check_branch
      %31 = sbr.rel (0) target = $region13
    $region12: #{tpu_custom_call.1} parent=1 // pred_region
      %32 = dma.done [#allocation5], 16
    $region13: #{tpu_custom_call.1} parent=1 // pred_fallthru
      _
    // Predicated region
    $region14: #{tpu_custom_call.1} parent=1 // pred_check
      _
    $region15: #{tpu_custom_call.1} parent=1 // pred_check_branch
      %34 = sbr.rel (0) target = $region17
    $region16: #{tpu_custom_call.1} parent=1 // pred_region
      %35 = dma.done [#allocation3], 256
    $region17: #{tpu_custom_call.1} parent=1 // pred_fallthru
      _
    %36 = sfence
    %v37 = vld [vmem:[#allocation6] sm:$0xff]
    %v38 = vld [vmem:[#allocation6 + $0x8] sm:$0xff]
    %s39 = sld [smem:[#allocation2]]
    %v40 = vmul.f32 %v37, %v37
    %v41 = vmul.f32 %v38, %v38
    %vm42 = vcmask 261120
    %v43 = vsel %vm42, %v40, 0.0
    %44 = vadd.xlane.f32.xlu0 %v43
    %v45 = vpop.xlane.xlu0 %44
    %v46 = vsel %vm42, %v41, 0.0
    %47 = vadd.xlane.f32.xlu0 %v46
    %v48 = vpop.xlane.xlu0 %47
    %v49 = vmax.f32 %v45, 1e-24
    %v50 = vmax.f32 %v48, 1e-24
    %v51 = vrsqrt.pop %v49
    %v52 = vrsqrt.pop %v50
    %v53 = vmul.f32 %v37, %v51
    %v54 = vmul.f32 %v38, %v52
    %v56 = vsel %vm42, %v53, 0
    %v59 = vsel %vm42, %v54, 0
    %61 = vmatprep.subr.mxu0 0.0
    %62 = vmatpush1.xpose.msra.mxu0 %v56
    %63 = vmatprep.subr.mxu0 0.0
    %64 = vmatpush1.xpose.msra.mxu0 %v59
    %65 = vmatprep.subr.mxu0 0.0
    %66 = vmatpush1.xpose.msra.mxu0 0.0
    %67 = vmatprep.subr.mxu0 0.0
    %68 = vmatpush1.xpose.msra.mxu0 0.0
    %69 = vmatprep.subr.mxu0 0.0
    %70 = vmatpush1.xpose.msra.mxu0 0.0
    %71 = vmatprep.subr.mxu0 0.0
    %72 = vmatpush1.xpose.msra.mxu0 0.0
    %73 = vmatprep.subr.mxu0 0.0
    %74 = vmatpush1.xpose.msra.mxu0 0.0
    %75 = vmatprep.subr.mxu0 0.0
    %76 = vmatpush1.xpose.msra.mxu0 0.0
    %77 = vmatprep.subr.mxu0 0.0
    %78 = vmatpush1.xpose.msra.mxu0 0.0
    %79 = vmatprep.subr.mxu0 0.0
    %80 = vmatpush1.xpose.msra.mxu0 0.0
    %81 = vmatprep.subr.mxu0 0.0
    %82 = vmatpush1.xpose.msra.mxu0 0.0
    %83 = vmatprep.subr.mxu0 0.0
    %84 = vmatpush1.xpose.msra.mxu0 0.0
    %85 = vmatprep.subr.mxu0 0.0
    %86 = vmatpush1.xpose.msra.mxu0 0.0
    %87 = vmatprep.subr.mxu0 0.0
    %88 = vmatpush1.xpose.msra.mxu0 0.0
    %89 = vmatprep.subr.mxu0 0.0
    %90 = vmatpush1.xpose.msra.mxu0 0.0
    %91 = vmatprep.subr.mxu0 0.0
    %92 = vmatpush1.xpose.msra.mxu0 0.0
    %93 = vmatprep.subr.mxu0 0.0
    %94 = vmatpush1.xpose.msra.mxu0 0.0
    %95 = vmatprep.subr.mxu0 0.0
    %96 = vmatpush1.xpose.msra.mxu0 0.0
    %97 = vmatprep.subr.mxu0 0.0
    %98 = vmatpush1.xpose.msra.mxu0 0.0
    %99 = vmatprep.subr.mxu0 0.0
    %100 = vmatpush1.xpose.msra.mxu0 0.0
    %101 = vmatprep.subr.mxu0 0.0
    %102 = vmatpush1.xpose.msra.mxu0 0.0
    %103 = vmatprep.subr.mxu0 0.0
    %104 = vmatpush1.xpose.msra.mxu0 0.0
    %105 = vmatprep.subr.mxu0 0.0
    %106 = vmatpush1.xpose.msra.mxu0 0.0
    %107 = vmatprep.subr.mxu0 0.0
    %108 = vmatpush1.xpose.msra.mxu0 0.0
    %109 = vmatprep.subr.mxu0 0.0
    %110 = vmatpush1.xpose.msra.mxu0 0.0
    %111 = vmatprep.subr.mxu0 0.0
    %112 = vmatpush1.xpose.msra.mxu0 0.0
    %113 = vmatprep.subr.mxu0 0.0
    %114 = vmatpush1.xpose.msra.mxu0 0.0
    %115 = vmatprep.subr.mxu0 0.0
    %116 = vmatpush1.xpose.msra.mxu0 0.0
    %117 = vmatprep.subr.mxu0 0.0
    %118 = vmatpush1.xpose.msra.mxu0 0.0
    %119 = vmatprep.subr.mxu0 0.0
    %120 = vmatpush1.xpose.msra.mxu0 0.0
    %121 = vmatprep.subr.mxu0 0.0
    %122 = vmatpush1.xpose.msra.mxu0 0.0
    %123 = vmatprep.subr.mxu0 0.0
    %124 = vmatpush1.xpose.msra.mxu0 0.0
    %125 = vmatprep.mubr.f32.mxu0 0.0
    %126 = vmatmul.mubr.f32.gmra.mrb[0].mxu0 %v56
    %v127 = vpop.f32.mrb[0].mxu0
    %v128 = vadd.f32 0.0, %v127
    %v129 = vpop.f32.mrb[0].mxu0
    %130 = vmatprep.mubr.f32.mxu0 0.0
    %131 = vmatmul.mubr.f32.gmra.mrb[0].mxu0 %v59
    %v132 = vpop.f32.mrb[0].mxu0
    %v133 = vadd.f32 0.0, %v132
    %v134 = vpop.f32.mrb[0].mxu0
    %135 = vdwg.mxu0
    %v136 = vstv %s39
    %v137 = vmul.f32 %v136, %v128
    %v138 = vmul.f32 %v136, %v133
    %vm139 = vcmask 130048
    %v140 = vsel %vm139, %v137, -inf
    %141 = vmax.xlane.f32.xlu0 %v140
    %v142 = vpop.xlane.xlu0 %141
    %v143 = vsel %vm139, %v138, -inf
    %144 = vmax.xlane.f32.xlu0 %v143
    %v145 = vpop.xlane.xlu0 %144
    %v146 = vsub.f32 %v137, %v142
    %v147 = vsub.f32 %v138, %v145
    %v148 = vmul.f32 %v146, 1.442695
    %v149 = vpow.pop %v148
    %v150 = vmul.f32 %v147, 1.442695
    %v151 = vpow.pop %v150
    %v152 = vsel %vm139, %v149, 0.0
    %153 = vadd.xlane.f32.xlu0 %v152
    %v154 = vpop.xlane.xlu0 %153
    %v155 = vsel %vm139, %v151, 0.0
    %156 = vadd.xlane.f32.xlu0 %v155
    %v157 = vpop.xlane.xlu0 %156
    %v158 = vrcp.pop %v154
    %v159 = vrcp.pop %v157
    %v160 = vmul.f32 %v149, %v158
    %v161 = vmul.f32 %v151, %v159
    %v163 = vsel %vm139, %v160, 0
    %v166 = vsel %vm139, %v161, 0
    %168 = vmatprep.subr.mxu0 0.0
    %169 = vmatpush1.msra.mxu0 %v37
    %170 = vmatprep.subr.mxu0 0.0
    %171 = vmatpush1.msra.mxu0 %v38
    %172 = vmatprep.subr.mxu0 0.0
    %173 = vmatpush1.msra.mxu0 0.0
    %174 = vmatprep.subr.mxu0 0.0
    %175 = vmatpush1.msra.mxu0 0.0
    %176 = vmatprep.subr.mxu0 0.0
    %177 = vmatpush1.msra.mxu0 0.0
    %178 = vmatprep.subr.mxu0 0.0
    %179 = vmatpush1.msra.mxu0 0.0
    %180 = vmatprep.subr.mxu0 0.0
    %181 = vmatpush1.msra.mxu0 0.0
    %182 = vmatprep.subr.mxu0 0.0
    %183 = vmatpush1.msra.mxu0 0.0
    %184 = vmatprep.subr.mxu0 0.0
    %185 = vmatpush1.msra.mxu0 0.0
    %186 = vmatprep.subr.mxu0 0.0
    %187 = vmatpush1.msra.mxu0 0.0
    %188 = vmatprep.subr.mxu0 0.0
    %189 = vmatpush1.msra.mxu0 0.0
    %190 = vmatprep.subr.mxu0 0.0
    %191 = vmatpush1.msra.mxu0 0.0
    %192 = vmatprep.subr.mxu0 0.0
    %193 = vmatpush1.msra.mxu0 0.0
    %194 = vmatprep.subr.mxu0 0.0
    %195 = vmatpush1.msra.mxu0 0.0
    %196 = vmatprep.subr.mxu0 0.0
    %197 = vmatpush1.msra.mxu0 0.0
    %198 = vmatprep.subr.mxu0 0.0
    %199 = vmatpush1.msra.mxu0 0.0
    %200 = vmatprep.subr.mxu0 0.0
    %201 = vmatpush1.msra.mxu0 0.0
    %202 = vmatprep.subr.mxu0 0.0
    %203 = vmatpush1.msra.mxu0 0.0
    %204 = vmatprep.subr.mxu0 0.0
    %205 = vmatpush1.msra.mxu0 0.0
    %206 = vmatprep.subr.mxu0 0.0
    %207 = vmatpush1.msra.mxu0 0.0
    %208 = vmatprep.subr.mxu0 0.0
    %209 = vmatpush1.msra.mxu0 0.0
    %210 = vmatprep.subr.mxu0 0.0
    %211 = vmatpush1.msra.mxu0 0.0
    %212 = vmatprep.subr.mxu0 0.0
    %213 = vmatpush1.msra.mxu0 0.0
    %214 = vmatprep.subr.mxu0 0.0
    %215 = vmatpush1.msra.mxu0 0.0
    %216 = vmatprep.subr.mxu0 0.0
    %217 = vmatpush1.msra.mxu0 0.0
    %218 = vmatprep.subr.mxu0 0.0
    %219 = vmatpush1.msra.mxu0 0.0
    %220 = vmatprep.subr.mxu0 0.0
    %221 = vmatpush1.msra.mxu0 0.0
    %222 = vmatprep.subr.mxu0 0.0
    %223 = vmatpush1.msra.mxu0 0.0
    %224 = vmatprep.subr.mxu0 0.0
    %225 = vmatpush1.msra.mxu0 0.0
    %226 = vmatprep.subr.mxu0 0.0
    %227 = vmatpush1.msra.mxu0 0.0
    %228 = vmatprep.subr.mxu0 0.0
    %229 = vmatpush1.msra.mxu0 0.0
    %230 = vmatprep.subr.mxu0 0.0
    %231 = vmatpush1.msra.mxu0 0.0
    %232 = vmatprep.mubr.f32.mxu0 0.0
    %233 = vmatmul.mubr.f32.gmra.mrb[0].mxu0 %v163
    %v234 = vpop.f32.mrb[0].mxu0
    %v235 = vadd.f32 0.0, %v234
    %v236 = vpop.f32.mrb[0].mxu0
    %237 = vmatprep.mubr.f32.mxu0 0.0
    %238 = vmatmul.mubr.f32.gmra.mrb[0].mxu0 %v166
    %v239 = vpop.f32.mrb[0].mxu0
    %v240 = vadd.f32 0.0, %v239
    %v241 = vpop.f32.mrb[0].mxu0
    %242 = vdwg.mxu0
    %s243 = sld [smem:[#allocation2 + $0x1]]
    %v244 = vmul.f32 %v235, %v235
    %v245 = vmul.f32 %v240, %v240
    %v246 = vsel %vm42, %v244, 0.0
    %247 = vadd.xlane.f32.xlu0 %v246
    %v248 = vpop.xlane.xlu0 %247
    %v249 = vsel %vm42, %v245, 0.0
    %250 = vadd.xlane.f32.xlu0 %v249
    %v251 = vpop.xlane.xlu0 %250
    %v252 = vmax.f32 %v248, 1e-24
    %v253 = vmax.f32 %v251, 1e-24
    %v254 = vrsqrt.pop %v252
    %v255 = vrsqrt.pop %v253
    %v256 = vmul.f32 %v235, %v254
    %v257 = vmul.f32 %v240, %v255
    %v259 = vsel %vm42, %v256, 0
    %v262 = vsel %vm42, %v257, 0
    %264 = vmatprep.subr.mxu0 0.0
    %265 = vmatpush1.xpose.msra.mxu0 %v259
    %266 = vmatprep.subr.mxu0 0.0
    %267 = vmatpush1.xpose.msra.mxu0 %v262
    %268 = vmatprep.subr.mxu0 0.0
    %269 = vmatpush1.xpose.msra.mxu0 0.0
    %270 = vmatprep.subr.mxu0 0.0
    %271 = vmatpush1.xpose.msra.mxu0 0.0
    %272 = vmatprep.subr.mxu0 0.0
    %273 = vmatpush1.xpose.msra.mxu0 0.0
    %274 = vmatprep.subr.mxu0 0.0
    %275 = vmatpush1.xpose.msra.mxu0 0.0
    %276 = vmatprep.subr.mxu0 0.0
    %277 = vmatpush1.xpose.msra.mxu0 0.0
    %278 = vmatprep.subr.mxu0 0.0
    %279 = vmatpush1.xpose.msra.mxu0 0.0
    %280 = vmatprep.subr.mxu0 0.0
    %281 = vmatpush1.xpose.msra.mxu0 0.0
    %282 = vmatprep.subr.mxu0 0.0
    %283 = vmatpush1.xpose.msra.mxu0 0.0
    %284 = vmatprep.subr.mxu0 0.0
    %285 = vmatpush1.xpose.msra.mxu0 0.0
    %286 = vmatprep.subr.mxu0 0.0
    %287 = vmatpush1.xpose.msra.mxu0 0.0
    %288 = vmatprep.subr.mxu0 0.0
    %289 = vmatpush1.xpose.msra.mxu0 0.0
    %290 = vmatprep.subr.mxu0 0.0
    %291 = vmatpush1.xpose.msra.mxu0 0.0
    %292 = vmatprep.subr.mxu0 0.0
    %293 = vmatpush1.xpose.msra.mxu0 0.0
    %294 = vmatprep.subr.mxu0 0.0
    %295 = vmatpush1.xpose.msra.mxu0 0.0
    %296 = vmatprep.subr.mxu0 0.0
    %297 = vmatpush1.xpose.msra.mxu0 0.0
    %298 = vmatprep.subr.mxu0 0.0
    %299 = vmatpush1.xpose.msra.mxu0 0.0
    %300 = vmatprep.subr.mxu0 0.0
    %301 = vmatpush1.xpose.msra.mxu0 0.0
    %302 = vmatprep.subr.mxu0 0.0
    %303 = vmatpush1.xpose.msra.mxu0 0.0
    %304 = vmatprep.subr.mxu0 0.0
    %305 = vmatpush1.xpose.msra.mxu0 0.0
    %306 = vmatprep.subr.mxu0 0.0
    %307 = vmatpush1.xpose.msra.mxu0 0.0
    %308 = vmatprep.subr.mxu0 0.0
    %309 = vmatpush1.xpose.msra.mxu0 0.0
    %310 = vmatprep.subr.mxu0 0.0
    %311 = vmatpush1.xpose.msra.mxu0 0.0
    %312 = vmatprep.subr.mxu0 0.0
    %313 = vmatpush1.xpose.msra.mxu0 0.0
    %314 = vmatprep.subr.mxu0 0.0
    %315 = vmatpush1.xpose.msra.mxu0 0.0
    %316 = vmatprep.subr.mxu0 0.0
    %317 = vmatpush1.xpose.msra.mxu0 0.0
    %318 = vmatprep.subr.mxu0 0.0
    %319 = vmatpush1.xpose.msra.mxu0 0.0
    %320 = vmatprep.subr.mxu0 0.0
    %321 = vmatpush1.xpose.msra.mxu0 0.0
    %322 = vmatprep.subr.mxu0 0.0
    %323 = vmatpush1.xpose.msra.mxu0 0.0
    %324 = vmatprep.subr.mxu0 0.0
    %325 = vmatpush1.xpose.msra.mxu0 0.0
    %326 = vmatprep.subr.mxu0 0.0
    %327 = vmatpush1.xpose.msra.mxu0 0.0
    %328 = vmatprep.mubr.f32.mxu0 0.0
    %329 = vmatmul.mubr.f32.gmra.mrb[0].mxu0 %v259
    %v330 = vpop.f32.mrb[0].mxu0
    %v331 = vadd.f32 0.0, %v330
    %v332 = vpop.f32.mrb[0].mxu0
    %333 = vmatprep.mubr.f32.mxu0 0.0
    %334 = vmatmul.mubr.f32.gmra.mrb[0].mxu0 %v262
    %v335 = vpop.f32.mrb[0].mxu0
    %v336 = vadd.f32 0.0, %v335
    %v337 = vpop.f32.mrb[0].mxu0
    %338 = vdwg.mxu0
    %v339 = vstv %s243
    %v340 = vmul.f32 %v339, %v331
    %v341 = vmul.f32 %v339, %v336
    %v342 = vsel %vm139, %v340, -inf
    %343 = vmax.xlane.f32.xlu0 %v342
    %v344 = vpop.xlane.xlu0 %343
    %v345 = vsel %vm139, %v341, -inf
    %346 = vmax.xlane.f32.xlu0 %v345
    %v347 = vpop.xlane.xlu0 %346
    %v348 = vsub.f32 %v340, %v344
    %v349 = vsub.f32 %v341, %v347
    %v350 = vmul.f32 %v348, 1.442695
    %v351 = vpow.pop %v350
    %v352 = vmul.f32 %v349, 1.442695
    %v353 = vpow.pop %v352
    %v354 = vsel %vm139, %v351, 0.0
    %355 = vadd.xlane.f32.xlu0 %v354
    %v356 = vpop.xlane.xlu0 %355
    %v357 = vsel %vm139, %v353, 0.0
    %358 = vadd.xlane.f32.xlu0 %v357
    %v359 = vpop.xlane.xlu0 %358
    %v360 = vrcp.pop %v356
    %v361 = vrcp.pop %v359
    %v362 = vmul.f32 %v351, %v360
    %v363 = vmul.f32 %v353, %v361
    %v365 = vsel %vm139, %v362, 0
    %v368 = vsel %vm139, %v363, 0
    %370 = vmatprep.subr.mxu0 0.0
    %371 = vmatpush1.msra.mxu0 %v235
    %372 = vmatprep.subr.mxu0 0.0
    %373 = vmatpush1.msra.mxu0 %v240
    %374 = vmatprep.subr.mxu0 0.0
    %375 = vmatpush1.msra.mxu0 0.0
    %376 = vmatprep.subr.mxu0 0.0
    %377 = vmatpush1.msra.mxu0 0.0
    %378 = vmatprep.subr.mxu0 0.0
    %379 = vmatpush1.msra.mxu0 0.0
    %380 = vmatprep.subr.mxu0 0.0
    %381 = vmatpush1.msra.mxu0 0.0
    %382 = vmatprep.subr.mxu0 0.0
    %383 = vmatpush1.msra.mxu0 0.0
    %384 = vmatprep.subr.mxu0 0.0
    %385 = vmatpush1.msra.mxu0 0.0
    %386 = vmatprep.subr.mxu0 0.0
    %387 = vmatpush1.msra.mxu0 0.0
    %388 = vmatprep.subr.mxu0 0.0
    %389 = vmatpush1.msra.mxu0 0.0
    %390 = vmatprep.subr.mxu0 0.0
    %391 = vmatpush1.msra.mxu0 0.0
    %392 = vmatprep.subr.mxu0 0.0
    %393 = vmatpush1.msra.mxu0 0.0
    %394 = vmatprep.subr.mxu0 0.0
    %395 = vmatpush1.msra.mxu0 0.0
    %396 = vmatprep.subr.mxu0 0.0
    %397 = vmatpush1.msra.mxu0 0.0
    %398 = vmatprep.subr.mxu0 0.0
    %399 = vmatpush1.msra.mxu0 0.0
    %400 = vmatprep.subr.mxu0 0.0
    %401 = vmatpush1.msra.mxu0 0.0
    %402 = vmatprep.subr.mxu0 0.0
    %403 = vmatpush1.msra.mxu0 0.0
    %404 = vmatprep.subr.mxu0 0.0
    %405 = vmatpush1.msra.mxu0 0.0
    %406 = vmatprep.subr.mxu0 0.0
    %407 = vmatpush1.msra.mxu0 0.0
    %408 = vmatprep.subr.mxu0 0.0
    %409 = vmatpush1.msra.mxu0 0.0
    %410 = vmatprep.subr.mxu0 0.0
    %411 = vmatpush1.msra.mxu0 0.0
    %412 = vmatprep.subr.mxu0 0.0
    %413 = vmatpush1.msra.mxu0 0.0
    %414 = vmatprep.subr.mxu0 0.0
    %415 = vmatpush1.msra.mxu0 0.0
    %416 = vmatprep.subr.mxu0 0.0
    %417 = vmatpush1.msra.mxu0 0.0
    %418 = vmatprep.subr.mxu0 0.0
    %419 = vmatpush1.msra.mxu0 0.0
    %420 = vmatprep.subr.mxu0 0.0
    %421 = vmatpush1.msra.mxu0 0.0
    %422 = vmatprep.subr.mxu0 0.0
    %423 = vmatpush1.msra.mxu0 0.0
    %424 = vmatprep.subr.mxu0 0.0
    %425 = vmatpush1.msra.mxu0 0.0
    %426 = vmatprep.subr.mxu0 0.0
    %427 = vmatpush1.msra.mxu0 0.0
    %428 = vmatprep.subr.mxu0 0.0
    %429 = vmatpush1.msra.mxu0 0.0
    %430 = vmatprep.subr.mxu0 0.0
    %431 = vmatpush1.msra.mxu0 0.0
    %432 = vmatprep.subr.mxu0 0.0
    %433 = vmatpush1.msra.mxu0 0.0
    %434 = vmatprep.mubr.f32.mxu0 0.0
    %435 = vmatmul.mubr.f32.gmra.mrb[0].mxu0 %v365
    %v436 = vpop.f32.mrb[0].mxu0
    %v437 = vadd.f32 0.0, %v436
    %v438 = vpop.f32.mrb[0].mxu0
    %439 = vmatprep.mubr.f32.mxu0 0.0
    %440 = vmatmul.mubr.f32.gmra.mrb[0].mxu0 %v368
    %v441 = vpop.f32.mrb[0].mxu0
    %v442 = vadd.f32 0.0, %v441
    %v443 = vpop.f32.mrb[0].mxu0
    %444 = vdwg.mxu0
    %445 = vst.msk [vmem:[#allocation7] sm:$0xff] %vm42, %v437
    %446 = vst.msk [vmem:[#allocation7 + $0x8] sm:$0xff] %vm42, %v442
    // Predicated region
    $region18: #{tpu_custom_call.1} parent=1 // pred_check
      _
    $region19: #{tpu_custom_call.1} parent=1 // pred_check_branch
      %448 = sbr.rel (0) target = $region21
    $region20: #{tpu_custom_call.1} parent=1 // pred_region
      %s450 = ssub.s32 256, 256
      %451 = vsyncadd [#allocation4], %s450
      %s452 = sshll.u32 [#allocation7], 4
      %s453 = int_to_ptr.vmem [resolvable:$true] %s452
      %458 = dma.vmem_to_hbm [thread:$0]  %s453, 256, %s2, [#allocation4], 128, 128, 8
    $region21: #{tpu_custom_call.1} parent=1 // pred_fallthru
      _
    // Predicated region
    $region22: #{tpu_custom_call.1} parent=1 // pred_check
      _
    $region23: #{tpu_custom_call.1} parent=1 // pred_check_branch
      %460 = sbr.rel (0) target = $region25
    $region24: #{tpu_custom_call.1} parent=1 // pred_region
      %461 = dma.done [#allocation4], 256
    $region25: #{tpu_custom_call.1} parent=1 // pred_fallthru
      _
    %462 = vsyncpa [#allocation3], 1
    %463 = vsyncpa [#allocation4], 1
    %464 = vsyncpa [#allocation5], 1

</llo_original>
